<compile_context>
chip_gen: v7x
topology: tpu7x:2x2x1
jax: 0.10.0
libtpu: 0.0.40
codegen_flags: <defaults>
</compile_context>

<pallas_src>
import numpy as np
import jax
import jax.numpy as jnp
from jax.experimental import pallas as pl
from jax.experimental.pallas import tpu as pltpu

EPS = 1e-5


def _adaptive_pool_matrix(L, P):
    """Matrix M (L, P) such that x @ M == AdaptiveAvgPool1d(P)(x) for x:(N, L)."""
    M = np.zeros((L, P), dtype=np.float32)
    for i in range(P):
        s = (i * L) // P
        e = -((-(i + 1) * L) // P)  # ceil((i+1)*L/P)
        M[s:e, i] = 1.0 / (e - s)
    return jnp.asarray(M)


def _decoder_kernel(z_ref, w_ref, b_ref, gamma_ref, beta_ref, o_ref):
    # z_ref:     (N, Z)   full latent block (whole batch resident -> exact BN stats)
    # w_ref:     (Z, TX)  fused (pooling @ fc) weight tile
    # b_ref:     (1, TX)  fc bias tile
    # gamma/beta:(1, TX)  BN affine tiles
    # o_ref:     (N, TX)  output tile
    y = jnp.dot(z_ref[...], w_ref[...], preferred_element_type=jnp.float32)
    y = y + b_ref[...]

    # BatchNorm1d training mode: per-feature batch mean / biased variance.
    mean = jnp.mean(y, axis=0, keepdims=True)
    var = jnp.mean((y - mean) ** 2, axis=0, keepdims=True)
    y_bn = (y - mean) * jax.lax.rsqrt(var + EPS) * gamma_ref[...] + beta_ref[...]

    o_ref[...] = jax.nn.sigmoid(y_bn).astype(o_ref.dtype)


def decoder_scrna_forward(z, wpool, w_fc, b_fc, gamma, beta, *,
                          tile_x=512, use_bf16=False):
    """Pallas forward of decoder_scRNA (domain_label=None).

    z:(N, Z) f32, wpool:(Z, P), w_fc:(P, X) (in x out), b_fc/gamma/beta:(1, X).
    """
    N, Z = z.shape
    X = w_fc.shape[1]

    # --- Fuse the adaptive average pool into the FC weight (both are linear). ---
    w_eff = (wpool @ w_fc).astype(jnp.float32)            # (Z, X)

    # --- Lane-dense feature tiling with padding for arbitrary X. ---
    tile_x = max(128, min(int(tile_x), pl.cdiv(X, 128) * 128))
    x_pad_total = pl.cdiv(X, tile_x) * tile_x
    pad = x_pad_total - X
    if pad:
        # Padded columns: w=0, b=0 -> y=0 -> BN(0)=0 -> sigmoid=0.5, sliced off below.
        w_eff = jnp.pad(w_eff, ((0, 0), (0, pad)))
        b_fc = jnp.pad(b_fc, ((0, 0), (0, pad)))
        gamma = jnp.pad(gamma, ((0, 0), (0, pad)), constant_values=1.0)
        beta = jnp.pad(beta, ((0, 0), (0, pad)))

    mm_dtype = jnp.bfloat16 if use_bf16 else jnp.float32
    z_mm = z.astype(mm_dtype)
    w_mm = w_eff.astype(mm_dtype)
    b_fc = b_fc.astype(jnp.float32)
    gamma = gamma.astype(jnp.float32)
    beta = beta.astype(jnp.float32)

    grid = (x_pad_total // tile_x,)
    mm_bytes = jnp.dtype(mm_dtype).itemsize

    # VMEM budget (double-buffered blocks) + headroom; explicit so v7x (64 MiB
    # physical / 32 MiB default scoped) never OOMs or silently spills.
    vmem_est = 2 * (N * Z * mm_bytes + Z * tile_x * mm_bytes
                    + 3 * tile_x * 4 + N * tile_x * 4)
    vmem_limit = int(min(100 * 1024 * 1024, max(3 * vmem_est, 32 * 1024 * 1024)))

    cost = pl.CostEstimate(
        flops=2 * N * Z * x_pad_total,
        transcendentals=N * x_pad_total,               # sigmoid
        bytes_accessed=int(z_mm.size * mm_bytes + w_mm.size * mm_bytes
                           + (b_fc.size + gamma.size + beta.size) * 4
                           + N * x_pad_total * 4),
    )

    out = pl.pallas_call(
        _decoder_kernel,
        out_shape=jax.ShapeDtypeStruct((N, x_pad_total), jnp.float32),
        grid_spec=pltpu.PrefetchScalarGridSpec(
            num_scalar_prefetch=0,
            grid=grid,
            in_specs=[
                pl.BlockSpec((N, Z), lambda j: (0, 0)),         # z (whole batch)
                pl.BlockSpec((Z, tile_x), lambda j: (0, j)),    # fused weight tile
                pl.BlockSpec((1, tile_x), lambda j: (0, j)),    # fc bias tile
                pl.BlockSpec((1, tile_x), lambda j: (0, j)),    # BN gamma tile
                pl.BlockSpec((1, tile_x), lambda j: (0, j)),    # BN beta tile
            ],
            out_specs=pl.BlockSpec((N, tile_x), lambda j: (0, j)),
        ),
        compiler_params=pltpu.CompilerParams(
            dimension_semantics=("parallel",),
            vmem_limit_bytes=vmem_limit,
        ),
        cost_estimate=cost,
    )(z_mm, w_mm, b_fc, gamma, beta)

    return out[:, :X] if pad else out


def reference_forward(z, wpool, w_fc, b_fc, gamma, beta):
    pooled = z @ wpool
    y = pooled @ w_fc + b_fc
    mean = jnp.mean(y, axis=0, keepdims=True)
    var = jnp.mean((y - mean) ** 2, axis=0, keepdims=True)
    y_bn = (y - mean) * jax.lax.rsqrt(var + EPS) * gamma + beta
    return jax.nn.sigmoid(y_bn)


if __name__ == "__main__":
    # Small shapes consistent with the module: latent z_dims=64 pooled to 16,
    # decoded to x_dims=250 genes (deliberately NOT a multiple of 128 to
    # exercise the padding path), batch of 8 cells.
    N, Z, P, X = 8, 64, 16, 250
    key = jax.random.PRNGKey(0)
    k_z, k_w, k_b = jax.random.split(key, 3)

    z = jax.random.normal(k_z, (N, Z), dtype=jnp.float32)

    # Deterministic parameter init (PyTorch nn.Linear-style uniform bound).
    bound = 1.0 / np.sqrt(P)
    w_fc = jax.random.uniform(k_w, (P, X), jnp.float32, -bound, bound)   # (in, out)
    b_fc = jax.random.uniform(k_b, (1, X), jnp.float32, -bound, bound)
    gamma = jnp.ones((1, X), jnp.float32)   # BatchNorm1d default affine init
    beta = jnp.zeros((1, X), jnp.float32)

    wpool = _adaptive_pool_matrix(Z, P)

    ref = reference_forward(z, wpool, w_fc, b_fc, gamma, beta)

    # f32 path: exact match with PyTorch-semantics reference.
    out_f32 = jax.block_until_ready(
        decoder_scrna_forward(z, wpool, w_fc, b_fc, gamma, beta, use_bf16=False))
    np.testing.assert_allclose(np.asarray(out_f32), np.asarray(ref),
                               rtol=1e-5, atol=1e-5)

    # bf16-operand path (MXU fast path, f32 accumulation + f32 BN/sigmoid):
    # looser tolerance due to bf16 mantissa.
    out_bf16 = jax.block_until_ready(
        decoder_scrna_forward(z, wpool, w_fc, b_fc, gamma, beta, use_bf16=True))
    np.testing.assert_allclose(np.asarray(out_bf16), np.asarray(ref),
                               rtol=0.0, atol=5e-2)

    print("KERNEL_OK")
</pallas_src>

<mosaic_0001>
module attributes {stable_mosaic.version = 11 : i64} {
  func.func @_decoder_kernel(%arg0: i32, %arg1: memref<8x64xf32, #tpu.memory_space<vmem>>, %arg2: memref<64x256xf32, #tpu.memory_space<vmem>>, %arg3: memref<1x256xf32, #tpu.memory_space<vmem>>, %arg4: memref<1x256xf32, #tpu.memory_space<vmem>>, %arg5: memref<1x256xf32, #tpu.memory_space<vmem>>, %arg6: memref<8x256xf32, #tpu.memory_space<vmem>>) attributes {dimension_semantics = [#tpu.dimension_semantics<parallel>], iteration_bounds = array<i64: 1>, scalar_prefetch = 0 : i64, scratch_operands = 0 : i64, tpu.core_type = #tpu.core_type<tc>, window_params = [{pipeline_mode = #tpu.pipeline_mode<synchronous>, transform_indices = @transform_0, window_bounds = array<i64: 8, 64>}, {transform_indices = @transform_1, window_bounds = array<i64: 64, 256>}, {transform_indices = @transform_2, window_bounds = array<i64: 1, 256>}, {transform_indices = @transform_3, window_bounds = array<i64: 1, 256>}, {transform_indices = @transform_4, window_bounds = array<i64: 1, 256>}, {transform_indices = @transform_5, window_bounds = array<i64: 8, 256>}]} {
    %c0 = arith.constant 0 : index
    %c0_0 = arith.constant 0 : index
    %0 = vector.load %arg1[%c0, %c0_0] : memref<8x64xf32, #tpu.memory_space<vmem>>, vector<8x64xf32>
    %c0_1 = arith.constant 0 : index
    %c0_2 = arith.constant 0 : index
    %1 = vector.load %arg2[%c0_1, %c0_2] : memref<64x256xf32, #tpu.memory_space<vmem>>, vector<64x256xf32>
    %cst = arith.constant dense<0.000000e+00> : vector<8x256xf32>
    %2 = tpu.matmul %0, %1, %cst {dimension_numbers = #tpu.dot_dimension_numbers<[1], [0], [0], [1], [0, 0, 1, 1], [], []>} : vector<8x64xf32>, vector<64x256xf32>, vector<8x256xf32> -> vector<8x256xf32>
    %c0_3 = arith.constant 0 : index
    %c0_4 = arith.constant 0 : index
    %3 = vector.load %arg3[%c0_3, %c0_4] : memref<1x256xf32, #tpu.memory_space<vmem>>, vector<1x256xf32>
    %4 = vector.broadcast %3 : vector<1x256xf32> to vector<8x256xf32>
    %5 = arith.addf %2, %4 : vector<8x256xf32>
    %cst_5 = arith.constant dense<0.000000e+00> : vector<256xf32>
    %6 = vector.multi_reduction <add>, %5, %cst_5 [0] : vector<8x256xf32> to vector<256xf32>
    %7 = vector.shape_cast %6 : vector<256xf32> to vector<1x256xf32>
    %cst_6 = arith.constant 8.000000e+00 : f32
    %8 = vector.broadcast %cst_6 : f32 to vector<1x256xf32>
    %9 = arith.divf %7, %8 : vector<1x256xf32>
    %10 = vector.broadcast %9 : vector<1x256xf32> to vector<8x256xf32>
    %11 = arith.subf %5, %10 : vector<8x256xf32>
    %12 = arith.mulf %11, %11 : vector<8x256xf32>
    %cst_7 = arith.constant dense<0.000000e+00> : vector<256xf32>
    %13 = vector.multi_reduction <add>, %12, %cst_7 [0] : vector<8x256xf32> to vector<256xf32>
    %14 = vector.shape_cast %13 : vector<256xf32> to vector<1x256xf32>
    %cst_8 = arith.constant 8.000000e+00 : f32
    %15 = vector.broadcast %cst_8 : f32 to vector<1x256xf32>
    %16 = arith.divf %14, %15 : vector<1x256xf32>
    %17 = vector.broadcast %9 : vector<1x256xf32> to vector<8x256xf32>
    %18 = arith.subf %5, %17 : vector<8x256xf32>
    %cst_9 = arith.constant 9.99999974E-6 : f32
    %19 = vector.broadcast %cst_9 : f32 to vector<1x256xf32>
    %20 = arith.addf %16, %19 : vector<1x256xf32>
    %21 = math.rsqrt %20 : vector<1x256xf32>
    %22 = vector.broadcast %21 : vector<1x256xf32> to vector<8x256xf32>
    %23 = arith.mulf %18, %22 : vector<8x256xf32>
    %c0_10 = arith.constant 0 : index
    %c0_11 = arith.constant 0 : index
    %24 = vector.load %arg4[%c0_10, %c0_11] : memref<1x256xf32, #tpu.memory_space<vmem>>, vector<1x256xf32>
    %25 = vector.broadcast %24 : vector<1x256xf32> to vector<8x256xf32>
    %26 = arith.mulf %23, %25 : vector<8x256xf32>
    %c0_12 = arith.constant 0 : index
    %c0_13 = arith.constant 0 : index
    %27 = vector.load %arg5[%c0_12, %c0_13] : memref<1x256xf32, #tpu.memory_space<vmem>>, vector<1x256xf32>
    %28 = vector.broadcast %27 : vector<1x256xf32> to vector<8x256xf32>
    %29 = arith.addf %26, %28 : vector<8x256xf32>
    %30 = arith.negf %29 : vector<8x256xf32>
    %31 = math.exp %30 : vector<8x256xf32>
    %cst_14 = arith.constant 1.000000e+00 : f32
    %32 = vector.broadcast %cst_14 : f32 to vector<8x256xf32>
    %33 = arith.addf %32, %31 : vector<8x256xf32>
    %34 = arith.divf %32, %33 : vector<8x256xf32>
    %c0_15 = arith.constant 0 : index
    %c0_16 = arith.constant 0 : index
    %35 = vector.load %arg6[%c0_15, %c0_16] : memref<8x256xf32, #tpu.memory_space<vmem>>, vector<8x256xf32>
    tpu.vector_store %arg6[%c0_15, %c0_16], %34 {strides = array<i32>} : memref<8x256xf32, #tpu.memory_space<vmem>>, vector<8x256xf32>,
    return
  }
  func.func @transform_0(%arg0: i32) -> (i32, i32) {
    %c0_i32 = arith.constant 0 : i32
    %c0_i32_0 = arith.constant 0 : i32
    %c0_i32_1 = arith.constant 0 : i32
    return %c0_i32, %c0_i32_0 : i32, i32
  }
  func.func @transform_1(%arg0: i32) -> (i32, i32) {
    %c0_i32 = arith.constant 0 : i32
    %c0_i32_0 = arith.constant 0 : i32
    return %c0_i32, %arg0 : i32, i32
  }
  func.func @transform_2(%arg0: i32) -> (i32, i32) {
    %c0_i32 = arith.constant 0 : i32
    %c0_i32_0 = arith.constant 0 : i32
    return %c0_i32, %arg0 : i32, i32
  }
  func.func @transform_3(%arg0: i32) -> (i32, i32) {
    %c0_i32 = arith.constant 0 : i32
    %c0_i32_0 = arith.constant 0 : i32
    return %c0_i32, %arg0 : i32, i32
  }
  func.func @transform_4(%arg0: i32) -> (i32, i32) {
    %c0_i32 = arith.constant 0 : i32
    %c0_i32_0 = arith.constant 0 : i32
    return %c0_i32, %arg0 : i32, i32
  }
  func.func @transform_5(%arg0: i32) -> (i32, i32) {
    %c0_i32 = arith.constant 0 : i32
    %c0_i32_0 = arith.constant 0 : i32
    return %c0_i32, %arg0 : i32, i32
  }
}

</mosaic_0001>

<llo_original>
// kernel: tpu_custom_call.1
$region0: #{tpu_custom_call.1}
  #allocation0 [shape = 'u32[]', space=smem, size = 0x4, offset = 0x4, fixed_abs, tag = 'smem constant byte address 0x4 - core index']
  #allocation1 [shape = 'u32[144,128]{1,0:T(1,128)}', space=vmem, size = 0x12000, scoped, tag = 'internal scratch']
  %s0 = inlined_call_operand.hbm [shape: f32[8,64], index: 0, kind: input, shape index: {}]
  %s1 = inlined_call_operand.hbm [shape: f32[64,256], index: 1, kind: input, shape index: {}]
  %s2 = inlined_call_operand.vmem [shape: f32[1,256], index: 2, kind: input, shape index: {}]
  %s3 = inlined_call_operand.vmem [shape: f32[1,256], index: 3, kind: input, shape index: {}]
  %s4 = inlined_call_operand.vmem [shape: f32[1,256], index: 4, kind: input, shape index: {}]
  %s5 = inlined_call_operand.hbm [shape: f32[8,256], index: 5, kind: output, shape index: {}]
  %s6 = sld [smem:[#allocation0]]
  $region38: #{tpu_custom_call.1} parent=0
    _
  %s8 = ssub.s32 1, %s6
  %s9 = scalar_select 0, %s8, %s6
  $region1: #{tpu_custom_call.1} parent=0
    #allocation2 [shape = 'u8[4096]{0}', space=vmem, size = 0x1000, scoped, tag = 'input window, operand 0, single buffered']
    #allocation3 [shape = 's32[1]{0}', space=sflag, size = 0x4, scoped, tag = 'scoped memory for tpu_custom_call.1']
    #allocation4 [shape = 's32[1]{0}', space=sflag, size = 0x4, scoped, tag = 'scoped memory for tpu_custom_call.1']
    #allocation5 [shape = 'u8[65536]{0}', space=vmem, size = 0x10000, scoped, tag = 'input window, operand 1, single buffered']
    #allocation6 [shape = 's32[1]{0}', space=sflag, size = 0x4, scoped, tag = 'scoped memory for tpu_custom_call.1']
    #allocation7 [shape = 'u8[8192]{0}', space=vmem, size = 0x2000, scoped, tag = 'output window, operand 0, single buffered']
    %10 = vsyncpa [#allocation3], 0
    %11 = vsyncpa [#allocation6], 0
    %12 = vsyncpa [#allocation4], 0
    // Predicated region
    $region2: #{tpu_custom_call.1} parent=1 // pred_check
      _
    $region3: #{tpu_custom_call.1} parent=1 // pred_check_branch
      %14 = sbr.rel (0) target = $region5
    $region4: #{tpu_custom_call.1} parent=1 // pred_region
      %s16 = ssub.s32 128, 128
      %17 = vsyncadd [#allocation3], %s16
      %s19 = sshll.u32 [#allocation2], 4
      %s20 = int_to_ptr.vmem [resolvable:$true] %s19
      %22 = dma.hbm_to_vmem [thread:$0]  %s0, 128, %s20, [#allocation3]
    $region5: #{tpu_custom_call.1} parent=1 // pred_fallthru
      _
    // Predicated region
    $region6: #{tpu_custom_call.1} parent=1 // pred_check
      _
    $region7: #{tpu_custom_call.1} parent=1 // pred_check_branch
      %24 = sbr.rel (0) target = $region9
    $region8: #{tpu_custom_call.1} parent=1 // pred_region
      %s26 = ssub.s32 2048, 2048
      %27 = vsyncadd [#allocation6], %s26
      %s28 = sshll.u32 [#allocation5], 4
      %s29 = int_to_ptr.vmem [resolvable:$true] %s28
      %34 = dma.hbm_to_vmem [thread:$0]  %s1, 2048, %s29, [#allocation6], 256, 256, 16
    $region9: #{tpu_custom_call.1} parent=1 // pred_fallthru
      _
    // Predicated region
    $region10: #{tpu_custom_call.1} parent=1 // pred_check
      _
    $region11: #{tpu_custom_call.1} parent=1 // pred_check_branch
      %36 = sbr.rel (0) target = $region13
    $region12: #{tpu_custom_call.1} parent=1 // pred_region
      _
    $region13: #{tpu_custom_call.1} parent=1 // pred_fallthru
      _
    // Predicated region
    $region14: #{tpu_custom_call.1} parent=1 // pred_check
      _
    $region15: #{tpu_custom_call.1} parent=1 // pred_check_branch
      %38 = sbr.rel (0) target = $region17
    $region16: #{tpu_custom_call.1} parent=1 // pred_region
      _
    $region17: #{tpu_custom_call.1} parent=1 // pred_fallthru
      _
    // Predicated region
    $region18: #{tpu_custom_call.1} parent=1 // pred_check
      _
    $region19: #{tpu_custom_call.1} parent=1 // pred_check_branch
      %40 = sbr.rel (0) target = $region21
    $region20: #{tpu_custom_call.1} parent=1 // pred_region
      _
    $region21: #{tpu_custom_call.1} parent=1 // pred_fallthru
      _
    // Predicated region
    $region22: #{tpu_custom_call.1} parent=1 // pred_check
      _
    $region23: #{tpu_custom_call.1} parent=1 // pred_check_branch
      %42 = sbr.rel (0) target = $region25
    $region24: #{tpu_custom_call.1} parent=1 // pred_region
      %43 = dma.done [#allocation3], 128
    $region25: #{tpu_custom_call.1} parent=1 // pred_fallthru
      _
    // Predicated region
    $region26: #{tpu_custom_call.1} parent=1 // pred_check
      _
    $region27: #{tpu_custom_call.1} parent=1 // pred_check_branch
      %45 = sbr.rel (0) target = $region29
    $region28: #{tpu_custom_call.1} parent=1 // pred_region
      %46 = dma.done [#allocation6], 2048
    $region29: #{tpu_custom_call.1} parent=1 // pred_fallthru
      _
    %v47 = vld [vmem:[#allocation2] sm:$0xff]
    %v48 = vld [vmem:[#allocation5] sm:$0xff]
    %v49 = vld [vmem:[#allocation5 + $0x8] sm:$0xff]
    %v50 = vld [vmem:[#allocation5 + $0x10] sm:$0xff]
    %v51 = vld [vmem:[#allocation5 + $0x18] sm:$0xff]
    %v52 = vld [vmem:[#allocation5 + $0x20] sm:$0xff]
    %v53 = vld [vmem:[#allocation5 + $0x28] sm:$0xff]
    %v54 = vld [vmem:[#allocation5 + $0x30] sm:$0xff]
    %v55 = vld [vmem:[#allocation5 + $0x38] sm:$0xff]
    %v56 = vld [vmem:[#allocation5 + $0x40] sm:$0xff]
    %v57 = vld [vmem:[#allocation5 + $0x48] sm:$0xff]
    %v58 = vld [vmem:[#allocation5 + $0x50] sm:$0xff]
    %v59 = vld [vmem:[#allocation5 + $0x58] sm:$0xff]
    %v60 = vld [vmem:[#allocation5 + $0x60] sm:$0xff]
    %v61 = vld [vmem:[#allocation5 + $0x68] sm:$0xff]
    %v62 = vld [vmem:[#allocation5 + $0x70] sm:$0xff]
    %v63 = vld [vmem:[#allocation5 + $0x78] sm:$0xff]
    %v64 = vld [vmem:[%s2] sm:$0x3]
    %v66 = vlaneseq
    %v67 = vshrl.u32 %v66, 7
    %v68 = vsub.s32 0, %v67
    %v69 = vrot.slane %v64, %v68
    %v70 = vlaneseq
    %v71 = vshrl.u32 %v70, 7
    %v72 = vsub.s32 1, %v71
    %v73 = vrot.slane %v64, %v72
    %vm76 = vcmask 523264
    %v78 = vsel %vm76, %v47, 0
    %80 = vmatprep.subr.mxu0 %v49
    %81 = vmatpush1.msra.mxu0 %v48
    %82 = vmatprep.subr.mxu0 %v51
    %83 = vmatpush1.msra.mxu0 %v50
    %84 = vmatprep.subr.mxu0 %v53
    %85 = vmatpush1.msra.mxu0 %v52
    %86 = vmatprep.subr.mxu0 %v55
    %87 = vmatpush1.msra.mxu0 %v54
    %88 = vmatprep.subr.mxu0 %v57
    %89 = vmatpush1.msra.mxu0 %v56
    %90 = vmatprep.subr.mxu0 %v59
    %91 = vmatpush1.msra.mxu0 %v58
    %92 = vmatprep.subr.mxu0 %v61
    %93 = vmatpush1.msra.mxu0 %v60
    %94 = vmatprep.subr.mxu0 %v63
    %95 = vmatpush1.msra.mxu0 %v62
    %96 = vmatprep.subr.mxu0 0.0
    %97 = vmatpush1.msra.mxu0 0.0
    %98 = vmatprep.subr.mxu0 0.0
    %99 = vmatpush1.msra.mxu0 0.0
    %100 = vmatprep.subr.mxu0 0.0
    %101 = vmatpush1.msra.mxu0 0.0
    %102 = vmatprep.subr.mxu0 0.0
    %103 = vmatpush1.msra.mxu0 0.0
    %104 = vmatprep.subr.mxu0 0.0
    %105 = vmatpush1.msra.mxu0 0.0
    %106 = vmatprep.subr.mxu0 0.0
    %107 = vmatpush1.msra.mxu0 0.0
    %108 = vmatprep.subr.mxu0 0.0
    %109 = vmatpush1.msra.mxu0 0.0
    %110 = vmatprep.subr.mxu0 0.0
    %111 = vmatpush1.msra.mxu0 0.0
    %112 = vmatprep.subr.mxu0 0.0
    %113 = vmatpush1.msra.mxu0 0.0
    %114 = vmatprep.subr.mxu0 0.0
    %115 = vmatpush1.msra.mxu0 0.0
    %116 = vmatprep.subr.mxu0 0.0
    %117 = vmatpush1.msra.mxu0 0.0
    %118 = vmatprep.subr.mxu0 0.0
    %119 = vmatpush1.msra.mxu0 0.0
    %120 = vmatprep.subr.mxu0 0.0
    %121 = vmatpush1.msra.mxu0 0.0
    %122 = vmatprep.subr.mxu0 0.0
    %123 = vmatpush1.msra.mxu0 0.0
    %124 = vmatprep.subr.mxu0 0.0
    %125 = vmatpush1.msra.mxu0 0.0
    %126 = vmatprep.subr.mxu0 0.0
    %127 = vmatpush1.msra.mxu0 0.0
    %128 = vmatprep.subr.mxu0 0.0
    %129 = vmatpush1.msra.mxu0 0.0
    %130 = vmatprep.subr.mxu0 0.0
    %131 = vmatpush1.msra.mxu0 0.0
    %132 = vmatprep.subr.mxu0 0.0
    %133 = vmatpush1.msra.mxu0 0.0
    %134 = vmatprep.subr.mxu0 0.0
    %135 = vmatpush1.msra.mxu0 0.0
    %136 = vmatprep.subr.mxu0 0.0
    %137 = vmatpush1.msra.mxu0 0.0
    %138 = vmatprep.subr.mxu0 0.0
    %139 = vmatpush1.msra.mxu0 0.0
    %140 = vmatprep.subr.mxu0 0.0
    %141 = vmatpush1.msra.mxu0 0.0
    %142 = vmatprep.subr.mxu0 0.0
    %143 = vmatpush1.msra.mxu0 0.0
    %144 = vmatprep.mubr.f32.mxu0 0.0
    %145 = vmatmul.mubr.f32.gmra.mrb[0].mxu0 %v78
    %v146 = vpop.f32.mrb[0].mxu0
    %v147 = vadd.f32 %v69, %v146
    %v148 = vpop.f32.mrb[0].mxu0
    %v149 = vadd.f32 %v73, %v148
    %150 = vdwg.mxu0
    %v151 = vrot.slane %v147, 4
    %v152 = vadd.f32 %v147, %v151
    %v153 = vrot.slane %v152, 2
    %v154 = vadd.f32 %v152, %v153
    %v155 = vrot.slane %v154, 1
    %v156 = vadd.f32 %v154, %v155
    %v157 = vrot.slane %v149, 4
    %v158 = vadd.f32 %v149, %v157
    %v159 = vrot.slane %v158, 2
    %v160 = vadd.f32 %v158, %v159
    %v161 = vrot.slane %v160, 1
    %v162 = vadd.f32 %v160, %v161
    %v163 = vrcp.pop 8.0
    %v164 = vmul.f32 %v156, %v163
    %v165 = vmul.f32 %v162, %v163
    %v166 = vsub.f32 %v147, %v164
    %v167 = vsub.f32 %v149, %v165
    %v168 = vmul.f32 %v166, %v166
    %v169 = vmul.f32 %v167, %v167
    %v170 = vrot.slane %v168, 4
    %v171 = vadd.f32 %v168, %v170
    %v172 = vrot.slane %v171, 2
    %v173 = vadd.f32 %v171, %v172
    %v174 = vrot.slane %v173, 1
    %v175 = vadd.f32 %v173, %v174
    %v176 = vrot.slane %v169, 4
    %v177 = vadd.f32 %v169, %v176
    %v178 = vrot.slane %v177, 2
    %v179 = vadd.f32 %v177, %v178
    %v180 = vrot.slane %v179, 1
    %v181 = vadd.f32 %v179, %v180
    %v182 = vmul.f32 %v175, %v163
    %v183 = vmul.f32 %v181, %v163
    %v184 = vadd.f32 %v182, 1e-05
    %v185 = vadd.f32 %v183, 1e-05
    %v186 = vrsqrt.pop %v184
    %v187 = vrsqrt.pop %v185
    %v188 = vmul.f32 %v166, %v186
    %v189 = vmul.f32 %v167, %v187
    %v190 = vld [vmem:[%s3] sm:$0x3]
    %v192 = vlaneseq
    %v193 = vshrl.u32 %v192, 7
    %v194 = vsub.s32 0, %v193
    %v195 = vrot.slane %v190, %v194
    %v196 = vlaneseq
    %v197 = vshrl.u32 %v196, 7
    %v198 = vsub.s32 1, %v197
    %v199 = vrot.slane %v190, %v198
    %v202 = vmul.f32 %v188, %v195
    %v203 = vmul.f32 %v189, %v199
    %v204 = vld [vmem:[%s4] sm:$0x3]
    %v206 = vlaneseq
    %v207 = vshrl.u32 %v206, 7
    %v208 = vsub.s32 0, %v207
    %v209 = vrot.slane %v204, %v208
    %v210 = vlaneseq
    %v211 = vshrl.u32 %v210, 7
    %v212 = vsub.s32 1, %v211
    %v213 = vrot.slane %v204, %v212
    %v216 = vadd.f32 %v202, %v209
    %v217 = vadd.f32 %v203, %v213
    %v218 = vxor.u32 %v216, 2147483648
    %v219 = vxor.u32 %v217, 2147483648
    %v220 = vmul.f32 %v218, 1.442695
    %v221 = vpow.pop %v220
    %v222 = vmul.f32 %v219, 1.442695
    %v223 = vpow.pop %v222
    %v224 = vadd.f32 %v221, 1.0
    %v225 = vadd.f32 %v223, 1.0
    %v226 = vrcp.pop %v224
    %v227 = vmul.f32 1.0, %v226
    %v228 = vrcp.pop %v225
    %v229 = vmul.f32 1.0, %v228
    %230 = vst [vmem:[#allocation7] sm:$0xff] %v227
    %231 = vst [vmem:[#allocation7 + $0x8] sm:$0xff] %v229
    // Predicated region
    $region30: #{tpu_custom_call.1} parent=1 // pred_check
      _
    $region31: #{tpu_custom_call.1} parent=1 // pred_check_branch
      %233 = sbr.rel (0) target = $region33
    $region32: #{tpu_custom_call.1} parent=1 // pred_region
      %s235 = ssub.s32 256, 256
      %236 = vsyncadd [#allocation4], %s235
      %s238 = sshll.u32 [#allocation7], 4
      %s239 = int_to_ptr.vmem [resolvable:$true] %s238
      %241 = dma.vmem_to_hbm [thread:$0]  %s239, 256, %s5, [#allocation4]
    $region33: #{tpu_custom_call.1} parent=1 // pred_fallthru
      _
    // Predicated region
    $region34: #{tpu_custom_call.1} parent=1 // pred_check
      _
    $region35: #{tpu_custom_call.1} parent=1 // pred_check_branch
      %243 = sbr.rel (0) target = $region37
    $region36: #{tpu_custom_call.1} parent=1 // pred_region
      %244 = dma.done [#allocation4], 256
    $region37: #{tpu_custom_call.1} parent=1 // pred_fallthru
      _
    %245 = vsyncpa [#allocation3], 1
    %246 = vsyncpa [#allocation6], 1
    %247 = vsyncpa [#allocation4], 1

</llo_original>
